<compile_context>
chip_gen: v7x
topology: tpu7x:2x2x1
jax: 0.10.0
libtpu: 0.0.40
codegen_flags: <defaults>
</compile_context>

<pallas_src>
import functools

import jax
import jax.numpy as jnp
from jax.experimental import pallas as pl
from jax.experimental.pallas import tpu as pltpu


def _forward_matrix_kernel(pred_ref, tgt_ref, t_ref, out_ref, acc_ref, *,
                           true_n, block_n, steps_per_split, num_classes):
    """One grid step over a (TN, C) tile of rows.

    pred_ref : (TN, C)      caller-dtype tile of prediction logits
    tgt_ref  : (TN, 1) i32  tile of targets
    t_ref    : (C, C)       resident noise-transition matrix T
    out_ref  : (1, 8, 128)  per-split partial-sum block (written on last step)
    acc_ref  : (1, 1) f32   VMEM accumulator, persistent across inner steps
    """
    p = pl.program_id(0)   # split (parallel across TensorCores on v7x)
    i = pl.program_id(1)   # step within the split (reduction axis)

    @pl.when(i == 0)
    def _init():
        acc_ref[...] = jnp.zeros_like(acc_ref)

    pred = pred_ref[...].astype(jnp.float32)                     # (TN, C)

    # Full logsumexp per row (log-softmax denominator), max-shifted for safety.
    m = jnp.max(pred, axis=1, keepdims=True)                     # (TN, 1)
    lse = m + jnp.log(jnp.sum(jnp.exp(pred - m), axis=1, keepdims=True))

    # trow[n, :] = T[target[n], :] built in-kernel: one-hot @ T (MXU is idle).
    tgt = tgt_ref[...]                                           # (TN, 1) i32
    cls = jax.lax.broadcasted_iota(jnp.int32, (block_n, num_classes), 1)
    one_hot = (cls == tgt).astype(jnp.float32)                   # (TN, C)
    t_mat = t_ref[...].astype(jnp.float32)                       # (C, C)
    trow = jnp.dot(one_hot, t_mat, preferred_element_type=jnp.float32)

    # picked[n] = sum_j trow[n,j] * logp[n,j]  without materializing logp:
    #           = sum_j trow*pred - logsumexp * sum_j trow
    dotv = jnp.sum(trow * pred, axis=1, keepdims=True)           # (TN, 1)
    rsum = jnp.sum(trow, axis=1, keepdims=True)                  # (TN, 1)
    picked = dotv - lse * rsum                                   # (TN, 1)

    # Mask the ragged tail (no wrapper-side padding): rows >= true_n contribute
    # exactly 0; jnp.where is a select so garbage/NaN in those rows is dropped.
    row = jax.lax.broadcasted_iota(jnp.int32, (block_n, 1), 0)
    global_row = (p * steps_per_split + i) * block_n + row
    picked = jnp.where(global_row < true_n, picked, 0.0)

    acc_ref[...] += jnp.sum(picked, axis=0, keepdims=True)       # (1, 1)

    @pl.when(i == pl.num_programs(1) - 1)
    def _finalize():
        out_ref[...] = jnp.broadcast_to(acc_ref[...].reshape(1, 1, 1),
                                        out_ref.shape)


def _vmem_capacity_bytes():
    """Per-core VMEM capacity; conservative fallback = 64 MiB (v7x per-TC)."""
    try:
        cap = int(pltpu.get_tpu_info().vmem_capacity_bytes)
        if cap >= (64 << 20):
            return cap
    except Exception:
        pass
    return 64 << 20


def _choose_block_n(n, c, pred_itemsize, num_splits, stream_budget_bytes):
    """Largest row tile whose double-buffered streams fit the budget.

    Accounts for 128-lane padding: a (block_n, C<=128) block occupies 128 lanes
    in VMEM, and the (block_n, 1) int32 target block also pads to 128 lanes.
    """
    lanes = max(128, ((c + 127) // 128) * 128)
    bytes_per_row = 2 * (lanes * pred_itemsize) + 2 * (128 * 4)  # 2 = dbl-buffer
    tn = stream_budget_bytes // max(bytes_per_row, 1)
    sub = 8 if pred_itemsize >= 4 else (16 if pred_itemsize == 2 else 32)
    tn = max(sub, (tn // sub) * sub)
    # No point tiling beyond what one split has to cover.
    per_split = -(-n // num_splits)
    per_split = -(-per_split // sub) * sub
    return min(tn, per_split)
    # TODO(synk): for very large C (block_n=8 tile > VMEM budget) a C-tiled
    # two-pass / online log-softmax would be required.


def forward_matrix(predictions, target, T, num_classes, *, block_n=None,
                   num_splits=2):
    """predictions: (N, C) float, target: (N,) int, T: (C, C) float."""
    N, C = predictions.shape
    assert C == num_classes and T.shape == (C, C)

    target2d = target.astype(jnp.int32).reshape(N, 1)            # 4 B/row stream

    itemsize = jnp.dtype(predictions.dtype).itemsize
    sub = 8 if itemsize >= 4 else (16 if itemsize == 2 else 32)

    cap = _vmem_capacity_bytes()
    stream_budget = min(32 << 20, max(8 << 20, cap // 3))
    if block_n is None:
        block_n = _choose_block_n(N, C, itemsize, num_splits, stream_budget)
    assert block_n % sub == 0

    total_blocks = pl.cdiv(N, block_n)
    steps_per_split = pl.cdiv(total_blocks, num_splits)

    def row_block(p, i):
        # Clamp overhang steps of the split decomposition to the last real
        # block (their rows are >= N and get masked to 0 in-kernel anyway);
        # keeps every DMA in-bounds.
        return (jnp.minimum(p * steps_per_split + i, total_blocks - 1), 0)

    kernel = functools.partial(
        _forward_matrix_kernel, true_n=N, block_n=block_n,
        steps_per_split=steps_per_split, num_classes=C)

    vmem_limit = int(min(cap - (8 << 20), stream_budget + (16 << 20)))

    partials = pl.pallas_call(
        kernel,
        out_shape=jax.ShapeDtypeStruct((num_splits, 8, 128), jnp.float32),
        grid_spec=pltpu.PrefetchScalarGridSpec(
            num_scalar_prefetch=0,
            grid=(num_splits, steps_per_split),
            in_specs=[
                pl.BlockSpec((block_n, C), row_block),            # predictions
                pl.BlockSpec((block_n, 1), row_block),            # targets
                pl.BlockSpec((C, C), lambda p, i: (0, 0)),        # T (resident)
            ],
            out_specs=pl.BlockSpec((1, 8, 128), lambda p, i: (p, 0, 0)),
            scratch_shapes=[pltpu.VMEM((1, 1), jnp.float32)],
        ),
        compiler_params=pltpu.CompilerParams(
            # Split axis runs on separate TensorCores (v7x); inner axis carries
            # the shared accumulator -> arbitrary.
            dimension_semantics=("parallel", "arbitrary"),
            vmem_limit_bytes=vmem_limit,
        ),
    )(predictions, target2d, T)

    # NLLLoss(reduction='mean'): combine per-split partial sums, divide by N.
    return -jnp.sum(partials[:, 0, 0]) / jnp.float32(N)


def _reference(predictions, target, T):
    logp = jax.nn.log_softmax(predictions.astype(jnp.float32), axis=1)
    prod = jnp.einsum("ij,nj->ni", T.astype(jnp.float32), logp)
    picked = prod[jnp.arange(predictions.shape[0]), target]
    return -jnp.mean(picked)


if __name__ == "__main__":
    key = jax.random.PRNGKey(0)
    k1, k2, k3 = jax.random.split(key, 3)

    # Small shapes consistent with the module: batch N, num_classes C.
    N, C = 8, 32
    predictions = jax.random.normal(k1, (N, C), dtype=jnp.float32)
    target = jax.random.randint(k2, (N,), 0, C, dtype=jnp.int32)
    # Deterministic row-stochastic "noise transition" matrix T: (C, C).
    T = jax.nn.softmax(jax.random.normal(k3, (C, C), dtype=jnp.float32), axis=1)

    loss = jax.block_until_ready(forward_matrix(predictions, target, T, C))
    ref = _reference(predictions, target, T)
    assert jnp.allclose(loss, ref, atol=1e-5, rtol=1e-5), (loss, ref)

    # Second check: ragged N with a multi-step grid, exercising the per-split
    # accumulator, the in-kernel tail mask, and the clamped overhang steps.
    N2 = 300
    k4, k5 = jax.random.split(k1)
    p2 = jax.random.normal(k4, (N2, C), dtype=jnp.float32)
    t2 = jax.random.randint(k5, (N2,), 0, C, dtype=jnp.int32)
    loss2 = jax.block_until_ready(forward_matrix(p2, t2, T, C, block_n=128))
    ref2 = _reference(p2, t2, T)
    assert jnp.allclose(loss2, ref2, atol=1e-5, rtol=1e-5), (loss2, ref2)

    print("KERNEL_OK")
</pallas_src>

<mosaic_0001>
module attributes {stable_mosaic.version = 11 : i64} {
  func.func @_forward_matrix_kernel(%arg0: i32, %arg1: i32, %arg2: memref<8x32xf32, #tpu.memory_space<vmem>>, %arg3: memref<8x1xi32, #tpu.memory_space<vmem>>, %arg4: memref<32x32xf32, #tpu.memory_space<vmem>>, %arg5: memref<1x8x128xf32, #tpu.memory_space<vmem>>, %arg6: memref<1x1xf32, #tpu.memory_space<vmem>>) attributes {dimension_semantics = [#tpu.dimension_semantics<parallel>, #tpu.dimension_semantics<arbitrary>], iteration_bounds = array<i64: 2, 1>, scalar_prefetch = 0 : i64, scratch_operands = 1 : i64, tpu.core_type = #tpu.core_type<tc>, window_params = [{transform_indices = @transform_0, window_bounds = array<i64: 8, 32>}, {transform_indices = @transform_1, window_bounds = array<i64: 8, 1>}, {pipeline_mode = #tpu.pipeline_mode<synchronous>, transform_indices = @transform_2, window_bounds = array<i64: 32, 32>}, {transform_indices = @transform_3, window_bounds = array<i64: 1, 8, 128>}]} {
    %c0_i32 = arith.constant 0 : i32
    %0 = arith.cmpi eq, %arg1, %c0_i32 : i32
    %1 = arith.extui %0 : i1 to i32
    %c0_i32_0 = arith.constant 0 : i32
    %2 = arith.cmpi ne, %1, %c0_i32_0 : i32
    scf.if %2 {
      %cst_19 = arith.constant 0.000000e+00 : f32
      %46 = vector.broadcast %cst_19 : f32 to vector<1x1xf32>
      %c0_20 = arith.constant 0 : index
      %c0_21 = arith.constant 0 : index
      %47 = vector.load %arg6[%c0_20, %c0_21] : memref<1x1xf32, #tpu.memory_space<vmem>>, vector<1x1xf32>
      tpu.vector_store %arg6[%c0_20, %c0_21], %46 {strides = array<i32>} : memref<1x1xf32, #tpu.memory_space<vmem>>, vector<1x1xf32>,
    } else {
    }
    %c0 = arith.constant 0 : index
    %c0_1 = arith.constant 0 : index
    %3 = vector.load %arg2[%c0, %c0_1] : memref<8x32xf32, #tpu.memory_space<vmem>>, vector<8x32xf32>
    %cst = arith.constant dense<0xFF800000> : vector<8xf32>
    %4 = vector.multi_reduction <maximumf>, %3, %cst [1] : vector<8x32xf32> to vector<8xf32>
    %5 = vector.shape_cast %4 : vector<8xf32> to vector<8x1xf32>
    %6 = vector.broadcast %5 : vector<8x1xf32> to vector<8x32xf32>
    %7 = arith.subf %3, %6 : vector<8x32xf32>
    %8 = math.exp %7 : vector<8x32xf32>
    %cst_2 = arith.constant dense<0.000000e+00> : vector<8xf32>
    %9 = vector.multi_reduction <add>, %8, %cst_2 [1] : vector<8x32xf32> to vector<8xf32>
    %10 = vector.shape_cast %9 : vector<8xf32> to vector<8x1xf32>
    %11 = math.log %10 : vector<8x1xf32>
    %12 = arith.addf %5, %11 : vector<8x1xf32>
    %c0_3 = arith.constant 0 : index
    %c0_4 = arith.constant 0 : index
    %13 = vector.load %arg3[%c0_3, %c0_4] : memref<8x1xi32, #tpu.memory_space<vmem>>, vector<8x1xi32>
    %14 = tpu.iota {dimensions = array<i32: 1>} : vector<8x32xi32>
    %15 = vector.broadcast %13 : vector<8x1xi32> to vector<8x32xi32>
    %16 = arith.cmpi eq, %14, %15 : vector<8x32xi32>
    %17 = arith.extui %16 : vector<8x32xi1> to vector<8x32xi32>
    %18 = arith.sitofp %17 : vector<8x32xi32> to vector<8x32xf32>
    %c0_5 = arith.constant 0 : index
    %c0_6 = arith.constant 0 : index
    %19 = vector.load %arg4[%c0_5, %c0_6] : memref<32x32xf32, #tpu.memory_space<vmem>>, vector<32x32xf32>
    %cst_7 = arith.constant dense<0.000000e+00> : vector<8x32xf32>
    %20 = tpu.matmul %18, %19, %cst_7 {dimension_numbers = #tpu.dot_dimension_numbers<[1], [0], [0], [1], [0, 0, 1, 1], [], []>} : vector<8x32xf32>, vector<32x32xf32>, vector<8x32xf32> -> vector<8x32xf32>
    %21 = arith.mulf %20, %3 : vector<8x32xf32>
    %cst_8 = arith.constant dense<0.000000e+00> : vector<8xf32>
    %22 = vector.multi_reduction <add>, %21, %cst_8 [1] : vector<8x32xf32> to vector<8xf32>
    %23 = vector.shape_cast %22 : vector<8xf32> to vector<8x1xf32>
    %cst_9 = arith.constant dense<0.000000e+00> : vector<8xf32>
    %24 = vector.multi_reduction <add>, %20, %cst_9 [1] : vector<8x32xf32> to vector<8xf32>
    %25 = vector.shape_cast %24 : vector<8xf32> to vector<8x1xf32>
    %26 = arith.mulf %12, %25 : vector<8x1xf32>
    %27 = arith.subf %23, %26 : vector<8x1xf32>
    %28 = tpu.iota {dimensions = array<i32: 0>} : vector<8x1xi32>
    %c1_i32 = arith.constant 1 : i32
    %29 = arith.muli %arg0, %c1_i32 : i32
    %30 = arith.addi %29, %arg1 : i32
    %c8_i32 = arith.constant 8 : i32
    %31 = arith.muli %30, %c8_i32 : i32
    %32 = vector.broadcast %31 : i32 to vector<8x1xi32>
    %33 = arith.addi %32, %28 : vector<8x1xi32>
    %c8_i32_10 = arith.constant 8 : i32
    %34 = vector.broadcast %c8_i32_10 : i32 to vector<8x1xi32>
    %35 = arith.cmpi slt, %33, %34 : vector<8x1xi32>
    %cst_11 = arith.constant 0.000000e+00 : f32
    %36 = vector.broadcast %cst_11 : f32 to vector<8x1xf32>
    %37 = arith.select %35, %27, %36 : vector<8x1xi1>, vector<8x1xf32>
    %c0_12 = arith.constant 0 : index
    %c0_13 = arith.constant 0 : index
    %38 = vector.load %arg6[%c0_12, %c0_13] : memref<1x1xf32, #tpu.memory_space<vmem>>, vector<1x1xf32>
    %cst_14 = arith.constant dense<0.000000e+00> : vector<1xf32>
    %39 = vector.multi_reduction <add>, %37, %cst_14 [0] : vector<8x1xf32> to vector<1xf32>
    %40 = vector.shape_cast %39 : vector<1xf32> to vector<1x1xf32>
    %41 = arith.addf %38, %40 : vector<1x1xf32>
    %c0_15 = arith.constant 0 : index
    %c0_16 = arith.constant 0 : index
    %42 = vector.load %arg6[%c0_15, %c0_16] : memref<1x1xf32, #tpu.memory_space<vmem>>, vector<1x1xf32>
    tpu.vector_store %arg6[%c0_15, %c0_16], %41 {strides = array<i32>} : memref<1x1xf32, #tpu.memory_space<vmem>>, vector<1x1xf32>,
    %c0_i32_17 = arith.constant 0 : i32
    %43 = arith.cmpi eq, %arg1, %c0_i32_17 : i32
    %44 = arith.extui %43 : i1 to i32
    %c0_i32_18 = arith.constant 0 : i32
    %45 = arith.cmpi ne, %44, %c0_i32_18 : i32
    scf.if %45 {
      %c0_19 = arith.constant 0 : index
      %c0_20 = arith.constant 0 : index
      %46 = vector.load %arg6[%c0_19, %c0_20] : memref<1x1xf32, #tpu.memory_space<vmem>>, vector<1x1xf32>
      %47 = vector.shape_cast %46 : vector<1x1xf32> to vector<1x1x1xf32>
      %48 = vector.shape_cast %47 : vector<1x1x1xf32> to vector<1x1x1xf32>
      %49 = vector.broadcast %48 : vector<1x1x1xf32> to vector<1x8x128xf32>
      %c0_21 = arith.constant 0 : index
      %c0_22 = arith.constant 0 : index
      %c0_23 = arith.constant 0 : index
      %50 = vector.load %arg5[%c0_21, %c0_22, %c0_23] : memref<1x8x128xf32, #tpu.memory_space<vmem>>, vector<1x8x128xf32>
      tpu.vector_store %arg5[%c0_21, %c0_22, %c0_23], %49 {strides = array<i32>} : memref<1x8x128xf32, #tpu.memory_space<vmem>>, vector<1x8x128xf32>,
    } else {
    }
    return
  }
  func.func @transform_0(%arg0: i32, %arg1: i32) -> (i32, i32) {
    %c1_i32 = arith.constant 1 : i32
    %0 = arith.muli %arg0, %c1_i32 : i32
    %1 = arith.addi %0, %arg1 : i32
    %c0_i32 = arith.constant 0 : i32
    %2 = arith.minsi %1, %c0_i32 : i32
    %c0_i32_0 = arith.constant 0 : i32
    %c0_i32_1 = arith.constant 0 : i32
    return %2, %c0_i32_0 : i32, i32
  }
  func.func @transform_1(%arg0: i32, %arg1: i32) -> (i32, i32) {
    %c1_i32 = arith.constant 1 : i32
    %0 = arith.muli %arg0, %c1_i32 : i32
    %1 = arith.addi %0, %arg1 : i32
    %c0_i32 = arith.constant 0 : i32
    %2 = arith.minsi %1, %c0_i32 : i32
    %c0_i32_0 = arith.constant 0 : i32
    %c0_i32_1 = arith.constant 0 : i32
    return %2, %c0_i32_0 : i32, i32
  }
  func.func @transform_2(%arg0: i32, %arg1: i32) -> (i32, i32) {
    %c0_i32 = arith.constant 0 : i32
    %c0_i32_0 = arith.constant 0 : i32
    %c0_i32_1 = arith.constant 0 : i32
    return %c0_i32, %c0_i32_0 : i32, i32
  }
  func.func @transform_3(%arg0: i32, %arg1: i32) -> (i32, i32, i32) {
    %c0_i32 = arith.constant 0 : i32
    %c0_i32_0 = arith.constant 0 : i32
    %c0_i32_1 = arith.constant 0 : i32
    return %arg0, %c0_i32, %c0_i32_0 : i32, i32, i32
  }
}

</mosaic_0001>

<llo_original>
// kernel: tpu_custom_call.1
$region0: #{tpu_custom_call.1}
  #allocation0 [shape = 'u32[]', space=smem, size = 0x4, offset = 0x4, fixed_abs, tag = 'smem constant byte address 0x4 - core index']
  #allocation1 [shape = 'u32[144,128]{1,0:T(1,128)}', space=vmem, size = 0x12000, scoped, tag = 'internal scratch']
  #allocation2 [shape = 'f32[1,1]{1,0:T(1,128)}', space=vmem, size = 0x200, scoped, tag = 'scratch operand']
  %s0 = inlined_call_operand.vmem [shape: f32[8,32], index: 0, kind: input, shape index: {}]
  %s1 = inlined_call_operand.vmem [shape: s32[8,1], index: 1, kind: input, shape index: {}]
  %s2 = inlined_call_operand.hbm [shape: f32[32,32], index: 2, kind: input, shape index: {}]
  %s3 = inlined_call_operand.hbm [shape: f32[2,8,128], index: 3, kind: output, shape index: {}]
  %s4 = sld [smem:[#allocation0]]
  $region57: #{tpu_custom_call.1} parent=0
    _
  %s6 = ssub.s32 1, %s4
  %s7 = scalar_select 0, %s6, %s4
  $region1: #{tpu_custom_call.1} parent=0
    #allocation3 [shape = 'u8[16384]{0}', space=vmem, size = 0x4000, scoped, tag = 'input window, operand 2, single buffered']
    #allocation4 [shape = 's32[2]{0}', space=sflag, size = 0x8, scoped, tag = 'scoped memory for tpu_custom_call.1']
    #allocation5 [shape = 's32[2]{0}', space=sflag, size = 0x8, scoped, tag = 'scoped memory for tpu_custom_call.1']
    #allocation6 [shape = 'u8[8192]{0}', space=vmem, size = 0x2000, scoped, tag = 'output window, operand 0']
    %8 = vsyncpa [#allocation4], 0
    %9 = vsyncpa [#allocation5], 0
    %s10 = scalar_lea.sflag [#allocation5], 1
    %11 = vsyncpa %s10, 0
    loop: start=0, step=1, limit=4
    $region2: #{tpu_custom_call.1} parent=1 // loop_pre_header
      _
    $region3: #{tpu_custom_call.1} parent=1 // loop_header
      %s13 = sphi 0, %s17
      %p14 = scmp.ge.s32.totalorder %s13, 4
      %s20 = sphi 0, %s32
      %s21 = sphi 0, %s28
      %s22 = sphi 0, %s20
      %s23 = sphi 0, %s21
      %s24 = sphi 0, %s22
      %s25 = sphi 0, %s23
      %s41 = sphi 0, %s43
      %s44 = sphi 0, %s41
      %s45 = sphi 0, %s44
      %s61 = sphi 0, %s45
      %s73 = sphi 0, %s75
      %s76 = sphi 0, %s73
      %s77 = sphi 0, %s76
      %s93 = sphi 0, %s77
      %s97 = sphi 0, %s97
      %s99 = sphi 0, %s97
      %s100 = sphi 0, %s99
      %s114 = sphi 0, %s100
      %s120 = sphi 0, %s122
      %s123 = sphi 0, %s120
      %s124 = sphi 0, %s123
      %s140 = sphi 0, %s124
    $region4: #{tpu_custom_call.1} parent=1 // loop_header_branch
      %16 = sbr.rel (%p14) target = $region8
    $region5: #{tpu_custom_call.1} parent=1 // loop_body
      %s18 = ssub.s32 %s13, 1
      %s19 = ssub.s32 %s13, 2
      %s26 = sadd.s32 1, %s21
      %p27 = scmp.ge.s32.totalorder %s26, 1
      %s28 = scalar_select %p27, 0, %s26
      %s29 = sadd.s32 1, %s20
      %s30 = scalar_select %p27, %s29, %s20
      %p31 = scmp.ge.s32.totalorder %s30, 2
      %s32 = scalar_select %p31, 0, %s30
      %s33 = sadd.s32 %s20, %s21
      %p34 = scmp.lt.s32.totalorder %s33, 0
      %s35 = scalar_select %p34, %s33, 0
      %s36 = sadd.s32 %s32, %s28
      %p37 = scmp.lt.s32.totalorder %s36, 0
      %s38 = scalar_select %p37, %s36, 0
      %s39 = ssub.s32 %s35, %s38
      %p40 = scmp.eq.s32.totalorder %s39, 0
      %s42 = sadd.s32 %s41, 1
      %s43 = scalar_select %p40, %s41, %s42
      %p46 = pneg %p40
      %p47 = scmp.eq.s32.totalorder %s13, 1
      %p48 = por %p46, %p47
      %p49 = scmp.ne.s32.totalorder %s41, %s44
      %p50 = scmp.eq.s32.totalorder %s13, 0
      %p51 = por %p49, %p50
      %p52 = scmp.ne.s32.totalorder %s41, %s44
      %p53 = scmp.eq.s32.totalorder %s18, 1
      %p54 = por %p52, %p53
      %p55 = scmp.ne.s32.totalorder %s44, %s45
      %p56 = scmp.eq.s32.totalorder %s18, 0
      %p57 = por %p55, %p56
      %p58 = scmp.ne.s32.totalorder %s44, %s45
      %p59 = scmp.eq.s32.totalorder %s19, 1
      %p60 = por %p58, %p59
      %p62 = scmp.ne.s32.totalorder %s45, %s61
      %p63 = scmp.eq.s32.totalorder %s19, 0
      %p64 = por %p62, %p63
      %s65 = sadd.s32 %s20, %s21
      %p66 = scmp.lt.s32.totalorder %s65, 0
      %s67 = scalar_select %p66, %s65, 0
      %s68 = sadd.s32 %s32, %s28
      %p69 = scmp.lt.s32.totalorder %s68, 0
      %s70 = scalar_select %p69, %s68, 0
      %s71 = ssub.s32 %s67, %s70
      %p72 = scmp.eq.s32.totalorder %s71, 0
      %s74 = sadd.s32 %s73, 1
      %s75 = scalar_select %p72, %s73, %s74
      %p78 = pneg %p72
      %p79 = scmp.eq.s32.totalorder %s13, 1
      %p80 = por %p78, %p79
      %p81 = scmp.ne.s32.totalorder %s73, %s76
      %p82 = scmp.eq.s32.totalorder %s13, 0
      %p83 = por %p81, %p82
      %p84 = scmp.ne.s32.totalorder %s73, %s76
      %p85 = scmp.eq.s32.totalorder %s18, 1
      %p86 = por %p84, %p85
      %p87 = scmp.ne.s32.totalorder %s76, %s77
      %p88 = scmp.eq.s32.totalorder %s18, 0
      %p89 = por %p87, %p88
      %p90 = scmp.ne.s32.totalorder %s76, %s77
      %p91 = scmp.eq.s32.totalorder %s19, 1
      %p92 = por %p90, %p91
      %p94 = scmp.ne.s32.totalorder %s77, %s93
      %p95 = scmp.eq.s32.totalorder %s19, 0
      %p96 = por %p94, %p95
      %s98 = sadd.s32 %s97, 1
      %p101 = scmp.eq.s32.totalorder %s13, 1
      %p102 = scmp.ne.s32.totalorder %s97, %s99
      %p103 = scmp.eq.s32.totalorder %s13, 0
      %p104 = por %p102, %p103
      %p105 = scmp.ne.s32.totalorder %s97, %s99
      %p106 = scmp.eq.s32.totalorder %s18, 1
      %p107 = por %p105, %p106
      %p108 = scmp.ne.s32.totalorder %s99, %s100
      %p109 = scmp.eq.s32.totalorder %s18, 0
      %p110 = por %p108, %p109
      %p111 = scmp.ne.s32.totalorder %s99, %s100
      %p112 = scmp.eq.s32.totalorder %s19, 1
      %p113 = por %p111, %p112
      %p115 = scmp.ne.s32.totalorder %s100, %s114
      %p116 = scmp.eq.s32.totalorder %s19, 0
      %p117 = por %p115, %p116
      %s118 = ssub.s32 %s20, %s32
      %p119 = scmp.eq.s32.totalorder %s118, 0
      %s121 = sadd.s32 %s120, 1
      %s122 = scalar_select %p119, %s120, %s121
      %p125 = pneg %p119
      %p126 = scmp.eq.s32.totalorder %s13, 1
      %p127 = por %p125, %p126
      %p128 = scmp.ne.s32.totalorder %s120, %s123
      %p129 = scmp.eq.s32.totalorder %s13, 0
      %p130 = por %p128, %p129
      %p131 = scmp.ne.s32.totalorder %s120, %s123
      %p132 = scmp.eq.s32.totalorder %s18, 1
      %p133 = por %p131, %p132
      %p134 = scmp.ne.s32.totalorder %s123, %s124
      %p135 = scmp.eq.s32.totalorder %s18, 0
      %p136 = por %p134, %p135
      %p137 = scmp.ne.s32.totalorder %s123, %s124
      %p138 = scmp.eq.s32.totalorder %s19, 1
      %p139 = por %p137, %p138
      %p141 = scmp.ne.s32.totalorder %s124, %s140
      %p142 = scmp.eq.s32.totalorder %s19, 0
      %p143 = por %p141, %p142
      %p144 = scmp.le.s32.totalorder 1, %s13
      %p145 = scmp.lt.s32.totalorder %s13, 3
      %p146 = pnand %p144, %p145
      %p147 = pneg %p146
      // Predicated region
      $region9: #{tpu_custom_call.1} parent=5 // pred_check
        _
      $region10: #{tpu_custom_call.1} parent=5 // pred_check_branch
        %149 = sbr.rel (%p146) target = $region12
      $region11: #{tpu_custom_call.1} parent=5 // pred_region
        %s150 = ssub.s32 %s13, 1
        // Predicated region
        $region13: #{tpu_custom_call.1} parent=11 // pred_check
          %p151 = pneg %p110
        $region14: #{tpu_custom_call.1} parent=11 // pred_check_branch
          %153 = sbr.rel (%p151) target = $region16
        $region15: #{tpu_custom_call.1} parent=11 // pred_region
          %s155 = ssub.s32 512, 512
          %156 = vsyncadd [#allocation4], %s155
          %s157 = sshll.u32 [#allocation3], 4
          %s158 = int_to_ptr.vmem [resolvable:$true] %s157
          %163 = dma.hbm_to_vmem [thread:$0]  %s2, 512, %s158, [#allocation4], 128, 128, 8
        $region16: #{tpu_custom_call.1} parent=11 // pred_fallthru
          _
      $region12: #{tpu_custom_call.1} parent=5 // pred_fallthru
        _
      %p164 = scmp.lt.s32.totalorder %s13, 2
      // Predicated region
      $region17: #{tpu_custom_call.1} parent=5 // pred_check
        %p165 = pneg %p164
      $region18: #{tpu_custom_call.1} parent=5 // pred_check_branch
        %167 = sbr.rel (%p165) target = $region20
      $region19: #{tpu_custom_call.1} parent=5 // pred_region
        // Predicated region
        $region21: #{tpu_custom_call.1} parent=19 // pred_check
          %p168 = pneg %p51
        $region22: #{tpu_custom_call.1} parent=19 // pred_check_branch
          %170 = sbr.rel (%p168) target = $region24
        $region23: #{tpu_custom_call.1} parent=19 // pred_region
          %s171 = sadd.s32 %s20, %s21
          %p172 = scmp.lt.s32.totalorder %s171, 0
          %s173 = scalar_select %p172, %s171, 0
          %p174 = scmp.lt.s32.totalorder %s173, 0
          %s175 = scalar_select %p174, %s173, 0
          %s176 = smul.addr %s175, 8
          %s177 = scalar_lea.vmem %s0, %s176
          %s178 = sadd.s32 %s20, %s21
          %p179 = scmp.lt.s32.totalorder %s178, 0
          %s180 = scalar_select %p179, %s178, 0
        $region24: #{tpu_custom_call.1} parent=19 // pred_fallthru
          _
        // Predicated region
        $region25: #{tpu_custom_call.1} parent=19 // pred_check
          %p181 = pneg %p83
        $region26: #{tpu_custom_call.1} parent=19 // pred_check_branch
          %183 = sbr.rel (%p181) target = $region28
        $region27: #{tpu_custom_call.1} parent=19 // pred_region
          %s184 = sadd.s32 %s20, %s21
          %p185 = scmp.lt.s32.totalorder %s184, 0
          %s186 = scalar_select %p185, %s184, 0
          %p187 = scmp.lt.s32.totalorder %s186, 0
          %s188 = scalar_select %p187, %s186, 0
          %s189 = smul.addr %s188, 8
          %s190 = scalar_lea.vmem %s1, %s189
          %s191 = sadd.s32 %s20, %s21
          %p192 = scmp.lt.s32.totalorder %s191, 0
          %s193 = scalar_select %p192, %s191, 0
        $region28: #{tpu_custom_call.1} parent=19 // pred_fallthru
          _
      $region20: #{tpu_custom_call.1} parent=5 // pred_fallthru
        _
      %p194 = scmp.le.s32.totalorder 1, %s13
      %p195 = scmp.lt.s32.totalorder %s13, 3
      %p196 = pnand %p194, %p195
      %p197 = pneg %p196
      // Predicated region
      $region29: #{tpu_custom_call.1} parent=5 // pred_check
        _
      $region30: #{tpu_custom_call.1} parent=5 // pred_check_branch
        %199 = sbr.rel (%p196) target = $region32
      $region31: #{tpu_custom_call.1} parent=5 // pred_region
        %s200 = ssub.s32 %s13, 1
        // Predicated region
        $region33: #{tpu_custom_call.1} parent=31 // pred_check
          %p201 = pneg %p110
        $region34: #{tpu_custom_call.1} parent=31 // pred_check_branch
          %203 = sbr.rel (%p201) target = $region36
        $region35: #{tpu_custom_call.1} parent=31 // pred_region
          %204 = dma.done [#allocation4], 512
        $region36: #{tpu_custom_call.1} parent=31 // pred_fallthru
          _
        %s205 = sadd.s32 %s22, %s23
        %p206 = scmp.lt.s32.totalorder %s205, 0
        %s207 = scalar_select %p206, %s205, 0
        %p208 = scmp.lt.s32.totalorder %s207, 0
        %s209 = scalar_select %p208, %s207, 0
        %s210 = smul.addr %s209, 8
        %s211 = scalar_lea.vmem %s0, %s210
        %p212 = pneg %p57
        %p213 = pneg %p54
        %s214 = sadd.s32 %s22, %s23
        %p215 = scmp.lt.s32.totalorder %s214, 0
        %s216 = scalar_select %p215, %s214, 0
        %p217 = scmp.lt.s32.totalorder %s216, 0
        %s218 = scalar_select %p217, %s216, 0
        %s219 = smul.addr %s218, 8
        %s220 = scalar_lea.vmem %s1, %s219
        %p221 = pneg %p89
        %p222 = pneg %p86
        %p223 = pneg %p110
        %p224 = pneg %p107
        %p225 = pneg %p136
        %p226 = pneg %p133
        %s227 = sand.u32 %s123, 1
        %s228 = scalar_lea.sflag [#allocation5], %s227
        %s229 = sand.u32 %s123, 1
        %s230 = smul.addr %s229, 8
        %s231 = scalar_lea.vmem [#allocation6], %s230
        %s232 = sadd.s32 %s22, %s23
        %p233 = scmp.lt.s32.totalorder %s232, 0
        %s234 = scalar_select %p233, %s232, 0
        %p235 = scmp.lt.s32.totalorder %s234, 0
        %s236 = scalar_select %p235, %s234, 0
        %s237 = smul.addr %s236, 8
        %s238 = scalar_lea.vmem %s0, %s237
        %s239 = sadd.s32 %s22, %s23
        %p240 = scmp.lt.s32.totalorder %s239, 0
        %s241 = scalar_select %p240, %s239, 0
        %s242 = sadd.s32 %s22, %s23
        %p243 = scmp.lt.s32.totalorder %s242, 0
        %s244 = scalar_select %p243, %s242, 0
        %p245 = scmp.lt.s32.totalorder %s244, 0
        %s246 = scalar_select %p245, %s244, 0
        %s247 = smul.addr %s246, 8
        %s248 = scalar_lea.vmem %s1, %s247
        %s249 = sadd.s32 %s22, %s23
        %p250 = scmp.lt.s32.totalorder %s249, 0
        %s251 = scalar_select %p250, %s249, 0
        %p252 = scmp.eq.s32.totalorder %s23, 0
        // Predicated region
        $region37: #{tpu_custom_call.1} parent=31 // pred_check
          %p253 = pneg %p252
        $region38: #{tpu_custom_call.1} parent=31 // pred_check_branch
          %255 = sbr.rel (%p253) target = $region40
        $region39: #{tpu_custom_call.1} parent=31 // pred_region
          %vm256 = vcmask 0
          %257 = vst.msk [vmem:[#allocation2] sm:$0x1] %vm256, 0.0
        $region40: #{tpu_custom_call.1} parent=31 // pred_fallthru
          _
        %v258 = vld [vmem:[%s238] sm:$0xff]
        %vm259 = vcmask 261120
        %v260 = vsel %vm259, %v258, -inf
        %261 = vmax.xlane.f32.xlu0 %v260
        %v262 = vpop.xlane.xlu0 %261
        %v263 = vsub.f32 %v258, %v262
        %v264 = vmul.f32 %v263, 1.442695
        %v265 = vpow.pop %v264
        %v266 = vsel %vm259, %v265, 0.0
        %267 = vadd.xlane.f32.xlu0 %v266
        %v268 = vpop.xlane.xlu0 %267
        %v269 = vlog2.pop %v268
        %v270 = vmul.f32 %v269, 0.6931472
        %v271 = vadd.f32 %v262, %v270
        %v272 = vld [vmem:[%s248] sm:$0xff]
        %v273 = vlaneseq
        %v274 = vand.u32 %v273, 127
        %275 = vset.pattern.permute.xlu0 0
        %276 = vperm.xlu0 %275, %v272
        %v277 = vpop.permute.xlu0 %276
        %vm278 = vcmp.eq.s32.totalorder %v274, %v277
        %v279 = vsel %vm278, 1, 0
        %v280 = vcvt.s32.f32 %v279
        %v281 = vld [vmem:[#allocation3] sm:$0xff]
        %v282 = vld [vmem:[#allocation3 + $0x8] sm:$0xff]
        %v283 = vld [vmem:[#allocation3 + $0x10] sm:$0xff]
        %v284 = vld [vmem:[#allocation3 + $0x18] sm:$0xff]
        %v286 = vsel %vm259, %v280, 0
        %288 = vmatprep.subr.mxu0 0.0
        %289 = vmatpush1.msra.mxu0 %v281
        %290 = vmatprep.subr.mxu0 0.0
        %291 = vmatpush1.msra.mxu0 %v282
        %292 = vmatprep.subr.mxu0 0.0
        %293 = vmatpush1.msra.mxu0 %v283
        %294 = vmatprep.subr.mxu0 0.0
        %295 = vmatpush1.msra.mxu0 %v284
        %296 = vmatprep.subr.mxu0 0.0
        %297 = vmatpush1.msra.mxu0 0.0
        %298 = vmatprep.subr.mxu0 0.0
        %299 = vmatpush1.msra.mxu0 0.0
        %300 = vmatprep.subr.mxu0 0.0
        %301 = vmatpush1.msra.mxu0 0.0
        %302 = vmatprep.subr.mxu0 0.0
        %303 = vmatpush1.msra.mxu0 0.0
        %304 = vmatprep.subr.mxu0 0.0
        %305 = vmatpush1.msra.mxu0 0.0
        %306 = vmatprep.subr.mxu0 0.0
        %307 = vmatpush1.msra.mxu0 0.0
        %308 = vmatprep.subr.mxu0 0.0
        %309 = vmatpush1.msra.mxu0 0.0
        %310 = vmatprep.subr.mxu0 0.0
        %311 = vmatpush1.msra.mxu0 0.0
        %312 = vmatprep.subr.mxu0 0.0
        %313 = vmatpush1.msra.mxu0 0.0
        %314 = vmatprep.subr.mxu0 0.0
        %315 = vmatpush1.msra.mxu0 0.0
        %316 = vmatprep.subr.mxu0 0.0
        %317 = vmatpush1.msra.mxu0 0.0
        %318 = vmatprep.subr.mxu0 0.0
        %319 = vmatpush1.msra.mxu0 0.0
        %320 = vmatprep.subr.mxu0 0.0
        %321 = vmatpush1.msra.mxu0 0.0
        %322 = vmatprep.subr.mxu0 0.0
        %323 = vmatpush1.msra.mxu0 0.0
        %324 = vmatprep.subr.mxu0 0.0
        %325 = vmatpush1.msra.mxu0 0.0
        %326 = vmatprep.subr.mxu0 0.0
        %327 = vmatpush1.msra.mxu0 0.0
        %328 = vmatprep.subr.mxu0 0.0
        %329 = vmatpush1.msra.mxu0 0.0
        %330 = vmatprep.subr.mxu0 0.0
        %331 = vmatpush1.msra.mxu0 0.0
        %332 = vmatprep.subr.mxu0 0.0
        %333 = vmatpush1.msra.mxu0 0.0
        %334 = vmatprep.subr.mxu0 0.0
        %335 = vmatpush1.msra.mxu0 0.0
        %336 = vmatprep.subr.mxu0 0.0
        %337 = vmatpush1.msra.mxu0 0.0
        %338 = vmatprep.subr.mxu0 0.0
        %339 = vmatpush1.msra.mxu0 0.0
        %340 = vmatprep.subr.mxu0 0.0
        %341 = vmatpush1.msra.mxu0 0.0
        %342 = vmatprep.subr.mxu0 0.0
        %343 = vmatpush1.msra.mxu0 0.0
        %344 = vmatprep.subr.mxu0 0.0
        %345 = vmatpush1.msra.mxu0 0.0
        %346 = vmatprep.subr.mxu0 0.0
        %347 = vmatpush1.msra.mxu0 0.0
        %348 = vmatprep.subr.mxu0 0.0
        %349 = vmatpush1.msra.mxu0 0.0
        %350 = vmatprep.subr.mxu0 0.0
        %351 = vmatpush1.msra.mxu0 0.0
        %352 = vmatprep.mubr.f32.mxu0 0.0
        %353 = vmatmul.mubr.f32.gmra.mrb[0].mxu0 %v286
        %v354 = vpop.f32.mrb[0].mxu0
        %v355 = vadd.f32 0.0, %v354
        %v356 = vpop.f32.mrb[0].mxu0
        %357 = vdwg.mxu0
        %v358 = vmul.f32 %v355, %v258
        %v359 = vsel %vm259, %v358, 0.0
        %360 = vadd.xlane.f32.xlu0 %v359
        %v361 = vpop.xlane.xlu0 %360
        %v362 = vsel %vm259, %v355, 0.0
        %363 = vadd.xlane.f32.xlu0 %v362
        %v364 = vpop.xlane.xlu0 %363
        %v365 = vmul.f32 %v271, %v364
        %v366 = vsub.f32 %v361, %v365
        %v367 = vlaneseq
        %v368 = vshrl.u32 %v367, 7
        %s369 = sadd.s32 %s22, %s23
        %s370 = smul.u32 %s369, 8
        %v371 = vstv %s370
        %v372 = vadd.s32 %v371, %v368
        %vm373 = vcmp.lt.s32.totalorder %v372, 8
        %v374 = vsel %vm373, %v366, 0.0
        %v375 = vld [vmem:[#allocation2] sm:$0x1]
        %v376 = vrot.slane %v374, 4
        %v377 = vadd.f32 %v374, %v376
        %v378 = vrot.slane %v377, 2
        %v379 = vadd.f32 %v377, %v378
        %v380 = vrot.slane %v379, 1
        %v381 = vadd.f32 %v379, %v380
        %v382 = vadd.f32 %v375, %v381
        %vm383 = vcmask 0
        %384 = vst.msk [vmem:[#allocation2] sm:$0x1] %vm383, %v382
        // Predicated region
        $region41: #{tpu_custom_call.1} parent=31 // pred_check
          %p385 = pneg %p252
        $region42: #{tpu_custom_call.1} parent=31 // pred_check_branch
          %387 = sbr.rel (%p385) target = $region44
        $region43: #{tpu_custom_call.1} parent=31 // pred_region
          %v388 = vld [vmem:[#allocation2] sm:$0x1]
          %v390 = vlaneseq
          %v391 = vshrl.u32 %v390, 7
          %v392 = vsub.s32 0, %v391
          %v393 = vrot.slane %v388, %v392
          %394 = vset.pattern.permute.xlu0 0
          %395 = vperm.xlu0 %394, %v393
          %v396 = vpop.permute.xlu0 %395
          %398 = vst [vmem:[%s231] sm:$0xff] %v396
        $region44: #{tpu_custom_call.1} parent=31 // pred_fallthru
          _
        %s399 = sand.u32 %s123, 1
        %s400 = scalar_lea.sflag [#allocation5], %s399
        %s401 = sand.u32 %s123, 1
        %s402 = smul.addr %s401, 8
        %s403 = scalar_lea.vmem [#allocation6], %s402
        // Predicated region
        $region45: #{tpu_custom_call.1} parent=31 // pred_check
          %p404 = pneg %p133
        $region46: #{tpu_custom_call.1} parent=31 // pred_check_branch
          %406 = sbr.rel (%p404) target = $region48
        $region47: #{tpu_custom_call.1} parent=31 // pred_region
          %s408 = ssub.s32 128, 128
          %409 = vsyncadd %s400, %s408
          %s410 = smul.addr %s22, 128
          %s411 = scalar_lea.hbm %s3, %s410
          %s413 = sshll.u32 %s403, 4
          %s414 = int_to_ptr.vmem [resolvable:$true] %s413
          %416 = dma.vmem_to_hbm [thread:$0]  %s414, 128, %s411, %s400
        $region48: #{tpu_custom_call.1} parent=31 // pred_fallthru
          _
      $region32: #{tpu_custom_call.1} parent=5 // pred_fallthru
        _
      %p417 = scmp.le.s32.totalorder 2, %s13
      // Predicated region
      $region49: #{tpu_custom_call.1} parent=5 // pred_check
        %p418 = pneg %p417
      $region50: #{tpu_custom_call.1} parent=5 // pred_check_branch
        %420 = sbr.rel (%p418) target = $region52
      $region51: #{tpu_custom_call.1} parent=5 // pred_region
        %s421 = ssub.s32 %s13, 2
        // Predicated region
        $region53: #{tpu_custom_call.1} parent=51 // pred_check
          %p422 = pneg %p139
        $region54: #{tpu_custom_call.1} parent=51 // pred_check_branch
          %424 = sbr.rel (%p422) target = $region56
        $region55: #{tpu_custom_call.1} parent=51 // pred_region
          %s425 = sand.u32 %s124, 1
          %s426 = scalar_lea.sflag [#allocation5], %s425
          %s427 = sand.u32 %s124, 1
          %s428 = smul.addr %s427, 8
          %s429 = scalar_lea.vmem [#allocation6], %s428
          %430 = dma.done %s426, 128
        $region56: #{tpu_custom_call.1} parent=51 // pred_fallthru
          _
      $region52: #{tpu_custom_call.1} parent=5 // pred_fallthru
        _
    $region6: #{tpu_custom_call.1} parent=1 // loop_footer
      %s17 = sadd.s32 1, %s13
    $region7: #{tpu_custom_call.1} parent=1 // loop_footer_branch
      %12 = sbr.rel target = $region3
    $region8: #{tpu_custom_call.1} parent=1 // loop_exit
      _
    %431 = vsyncpa [#allocation4], 1
    %s432 = scalar_lea.sflag [#allocation4], 1
    %433 = vsyncpa %s432, 1
    %434 = vsyncpa [#allocation5], 1
    %s435 = scalar_lea.sflag [#allocation5], 1
    %436 = vsyncpa %s435, 1

</llo_original>
